<compile_context>
chip_gen: v7x
topology: tpu7x:2x2x1
jax: 0.10.0
libtpu: 0.0.40
codegen_flags: <defaults>
</compile_context>

<pallas_src>
import jax
import jax.numpy as jnp
from jax.experimental import pallas as pl
from jax.experimental.pallas import tpu as pltpu


def _round_up(n, m):
    return ((n + m - 1) // m) * m


def _symbolic19_kernel(p_ref, xt_ref, o_ref):
    # p_ref : SMEM f32[8]      (learned parameters)
    # xt_ref: VMEM f32[2, TB]  (row 0 = x[:, 3], row 1 = x[:, 4]; batch on lanes)
    # o_ref : VMEM f32[1, TB]  (lane-dense output tile)
    p0 = p_ref[0]
    p1 = p_ref[1]
    p2 = p_ref[2]
    p3 = p_ref[3]
    p4 = p_ref[4]
    p5 = p_ref[5]
    p6 = p_ref[6]
    p7 = p_ref[7]

    x3 = xt_ref[0:1, :]   # (1, TB) static sublane slice — lane-dense
    x4 = xt_ref[1:2, :]

    num = x3 * p0 + p1 * x4
    den = (p2 * x4 + p3 * x3) * (x3 * p4 + p5 * x4) * p6 + p7
    # Accurate reciprocal on the EUP + VPU multiply instead of a divide.
    o_ref[...] = num * pl.reciprocal(den, approx=False)


def symbolic19_forward(x, p, *, max_tile_lanes=4096):
    """x: f32[B, F] with F >= 5, p: f32[8]. Returns f32[B]."""
    B, F = x.shape
    assert F >= 5, "Symbolic19 reads x[:, 3] and x[:, 4]; need F >= 5"

    # Only move the two features actually used; batch goes to the lane dim.
    xt = jnp.transpose(x[:, 3:5]).astype(jnp.float32)          # (2, B)

    # 128-aligned, bounded tile size; pad batch up to a multiple of it.
    TB = min(_round_up(B, 128), max_tile_lanes)
    B_pad = _round_up(B, TB)
    if B_pad != B:
        # Zero padding is safe: den(x3=0, x4=0) = p7 != 0, and the pad lanes
        # are sliced off below.
        xt = jnp.pad(xt, ((0, 0), (0, B_pad - B)))

    grid = (B_pad // TB,)
    out = pl.pallas_call(
        _symbolic19_kernel,
        out_shape=jax.ShapeDtypeStruct((1, B_pad), jnp.float32),
        grid=grid,
        in_specs=[
            pl.BlockSpec(memory_space=pltpu.SMEM),              # 8 scalar params
            pl.BlockSpec((2, TB), lambda i: (0, i)),            # x3/x4 slab tile
        ],
        out_specs=pl.BlockSpec((1, TB), lambda i: (0, i)),      # lane-dense out
        compiler_params=pltpu.CompilerParams(
            dimension_semantics=("parallel",),
        ),
    )(p.astype(jnp.float32), xt)

    return out[0, :B].astype(x.dtype)


def symbolic19_reference(x, p):
    x3 = x[:, 3]
    x4 = x[:, 4]
    return (x3 * p[0] + p[1] * x4) / (
        (p[2] * x4 + p[3] * x3) * (x3 * p[4] + p[5] * x4) * p[6] + p[7]
    )


if __name__ == "__main__":
    # Deterministic parameters, exactly as in the module's __init__.
    p = jnp.array(
        [3.0173452, 1.0, 1.0, 1.0, 4.591682, 1.0, -0.1480232, -1.6779317],
        dtype=jnp.float32,
    )

    # Small example input: batch=8 cartpole states with 8 features (>= 5 used).
    key = jax.random.PRNGKey(0)
    x = jax.random.normal(key, (8, 8), dtype=jnp.float32)

    out = symbolic19_forward(x, p)
    out = jax.block_until_ready(out)

    ref = symbolic19_reference(x, p)
    assert out.shape == (8,)
    assert jnp.allclose(out, ref, rtol=1e-5, atol=1e-5), (out, ref)

    print("KERNEL_OK")
</pallas_src>

<mosaic_0001>
module attributes {stable_mosaic.version = 11 : i64} {
  func.func @_symbolic19_kernel(%arg0: i32, %arg1: memref<8xf32, #tpu.memory_space<smem>>, %arg2: memref<2x128xf32, #tpu.memory_space<vmem>>, %arg3: memref<1x128xf32, #tpu.memory_space<vmem>>) attributes {dimension_semantics = [#tpu.dimension_semantics<parallel>], iteration_bounds = array<i64: 1>, scalar_prefetch = 0 : i64, scratch_operands = 0 : i64, tpu.core_type = #tpu.core_type<tc>, window_params = [{transform_indices = @transform_0, window_bounds = array<i64: 8>}, {transform_indices = @transform_1, window_bounds = array<i64: 2, 128>}, {transform_indices = @transform_2, window_bounds = array<i64: 1, 128>}]} {
    %c0 = arith.constant 0 : index
    %0 = memref.load %arg1[%c0] : memref<8xf32, #tpu.memory_space<smem>>
    %c1 = arith.constant 1 : index
    %1 = memref.load %arg1[%c1] : memref<8xf32, #tpu.memory_space<smem>>
    %c2 = arith.constant 2 : index
    %2 = memref.load %arg1[%c2] : memref<8xf32, #tpu.memory_space<smem>>
    %c3 = arith.constant 3 : index
    %3 = memref.load %arg1[%c3] : memref<8xf32, #tpu.memory_space<smem>>
    %c4 = arith.constant 4 : index
    %4 = memref.load %arg1[%c4] : memref<8xf32, #tpu.memory_space<smem>>
    %c5 = arith.constant 5 : index
    %5 = memref.load %arg1[%c5] : memref<8xf32, #tpu.memory_space<smem>>
    %c6 = arith.constant 6 : index
    %6 = memref.load %arg1[%c6] : memref<8xf32, #tpu.memory_space<smem>>
    %c7 = arith.constant 7 : index
    %7 = memref.load %arg1[%c7] : memref<8xf32, #tpu.memory_space<smem>>
    %c0_0 = arith.constant 0 : index
    %c0_1 = arith.constant 0 : index
    %8 = vector.load %arg2[%c0_0, %c0_1] : memref<2x128xf32, #tpu.memory_space<vmem>>, vector<1x128xf32>
    %c1_2 = arith.constant 1 : index
    %c0_3 = arith.constant 0 : index
    %9 = vector.load %arg2[%c1_2, %c0_3] : memref<2x128xf32, #tpu.memory_space<vmem>>, vector<1x128xf32>
    %10 = vector.broadcast %0 : f32 to vector<1x128xf32>
    %11 = arith.mulf %8, %10 : vector<1x128xf32>
    %12 = vector.broadcast %1 : f32 to vector<1x128xf32>
    %13 = arith.mulf %12, %9 : vector<1x128xf32>
    %14 = arith.addf %11, %13 : vector<1x128xf32>
    %15 = vector.broadcast %2 : f32 to vector<1x128xf32>
    %16 = arith.mulf %15, %9 : vector<1x128xf32>
    %17 = vector.broadcast %3 : f32 to vector<1x128xf32>
    %18 = arith.mulf %17, %8 : vector<1x128xf32>
    %19 = arith.addf %16, %18 : vector<1x128xf32>
    %20 = vector.broadcast %4 : f32 to vector<1x128xf32>
    %21 = arith.mulf %8, %20 : vector<1x128xf32>
    %22 = vector.broadcast %5 : f32 to vector<1x128xf32>
    %23 = arith.mulf %22, %9 : vector<1x128xf32>
    %24 = arith.addf %21, %23 : vector<1x128xf32>
    %25 = arith.mulf %19, %24 : vector<1x128xf32>
    %26 = vector.broadcast %6 : f32 to vector<1x128xf32>
    %27 = arith.mulf %25, %26 : vector<1x128xf32>
    %28 = vector.broadcast %7 : f32 to vector<1x128xf32>
    %29 = arith.addf %27, %28 : vector<1x128xf32>
    %30 = tpu.reciprocal %29 : vector<1x128xf32> -> vector<1x128xf32>
    %31 = arith.mulf %14, %30 : vector<1x128xf32>
    %c0_4 = arith.constant 0 : index
    %c0_5 = arith.constant 0 : index
    %32 = vector.load %arg3[%c0_4, %c0_5] : memref<1x128xf32, #tpu.memory_space<vmem>>, vector<1x128xf32>
    tpu.vector_store %arg3[%c0_4, %c0_5], %31 {strides = array<i32>} : memref<1x128xf32, #tpu.memory_space<vmem>>, vector<1x128xf32>,
    return
  }
  func.func @transform_0(%arg0: i32) -> i32 {
    %c0_i32 = arith.constant 0 : i32
    %c0_i32_0 = arith.constant 0 : i32
    return %c0_i32 : i32
  }
  func.func @transform_1(%arg0: i32) -> (i32, i32) {
    %c0_i32 = arith.constant 0 : i32
    %c0_i32_0 = arith.constant 0 : i32
    return %c0_i32, %arg0 : i32, i32
  }
  func.func @transform_2(%arg0: i32) -> (i32, i32) {
    %c0_i32 = arith.constant 0 : i32
    %c0_i32_0 = arith.constant 0 : i32
    return %c0_i32, %arg0 : i32, i32
  }
}

</mosaic_0001>

<llo_original>
// kernel: tpu_custom_call.1
$region0: #{tpu_custom_call.1}
  #allocation0 [shape = 'u32[]', space=smem, size = 0x4, offset = 0x4, fixed_abs, tag = 'smem constant byte address 0x4 - core index']
  #allocation1 [shape = 'u32[144,128]{1,0:T(1,128)}', space=vmem, size = 0x12000, scoped, tag = 'internal scratch']
  %s0 = inlined_call_operand.hbm [shape: f32[8], index: 0, kind: input, shape index: {}]
  %s1 = inlined_call_operand.vmem [shape: f32[2,128], index: 1, kind: input, shape index: {}]
  %s2 = inlined_call_operand.hbm [shape: f32[1,128], index: 2, kind: output, shape index: {}]
  %s3 = sld [smem:[#allocation0]]
  $region22: #{tpu_custom_call.1} parent=0
    _
  %s5 = ssub.s32 1, %s3
  %s6 = scalar_select 0, %s5, %s3
  $region1: #{tpu_custom_call.1} parent=0
    #allocation2 [shape = 'u8[512]{0}', space=smem, size = 0x200, scoped, tag = 'input window, operand 0, single buffered']
    #allocation3 [shape = 's32[1]{0}', space=sflag, size = 0x4, scoped, tag = 'scoped memory for tpu_custom_call.1']
    #allocation4 [shape = 's32[1]{0}', space=sflag, size = 0x4, scoped, tag = 'scoped memory for tpu_custom_call.1']
    #allocation5 [shape = 'u8[512]{0}', space=vmem, size = 0x400, scoped, tag = 'output window, operand 0, single buffered']
    %7 = vsyncpa [#allocation4], 0
    %8 = vsyncpa [#allocation3], 0
    // Predicated region
    $region2: #{tpu_custom_call.1} parent=1 // pred_check
      _
    $region3: #{tpu_custom_call.1} parent=1 // pred_check_branch
      %10 = sbr.rel (0) target = $region5
    $region4: #{tpu_custom_call.1} parent=1 // pred_region
      %s12 = ssub.s32 16, 16
      %13 = vsyncadd [#allocation4], %s12
      %16 = dma.hbm_to_smem %s0, 16, [#allocation2], [#allocation4]
    $region5: #{tpu_custom_call.1} parent=1 // pred_fallthru
      _
    // Predicated region
    $region6: #{tpu_custom_call.1} parent=1 // pred_check
      _
    $region7: #{tpu_custom_call.1} parent=1 // pred_check_branch
      %18 = sbr.rel (0) target = $region9
    $region8: #{tpu_custom_call.1} parent=1 // pred_region
      _
    $region9: #{tpu_custom_call.1} parent=1 // pred_fallthru
      _
    // Predicated region
    $region10: #{tpu_custom_call.1} parent=1 // pred_check
      _
    $region11: #{tpu_custom_call.1} parent=1 // pred_check_branch
      %20 = sbr.rel (0) target = $region13
    $region12: #{tpu_custom_call.1} parent=1 // pred_region
      %21 = dma.done [#allocation4], 16
    $region13: #{tpu_custom_call.1} parent=1 // pred_fallthru
      _
    %22 = sfence
    %s23 = sld [smem:[#allocation2]]
    %s24 = sld [smem:[#allocation2 + $0x1]]
    %s25 = sld [smem:[#allocation2 + $0x2]]
    %s26 = sld [smem:[#allocation2 + $0x3]]
    %s27 = sld [smem:[#allocation2 + $0x4]]
    %s28 = sld [smem:[#allocation2 + $0x5]]
    %s29 = sld [smem:[#allocation2 + $0x6]]
    %s30 = sld [smem:[#allocation2 + $0x7]]
    %v31 = vld [vmem:[%s1] sm:$0x1]
    %v32 = vld [vmem:[%s1 + $0x1] sm:$0x1]
    %v33 = vstv %s23
    %v34 = vmul.f32 %v31, %v33
    %v35 = vstv %s24
    %v36 = vmul.f32 %v35, %v32
    %v37 = vadd.f32 %v34, %v36
    %v38 = vstv %s25
    %v39 = vmul.f32 %v38, %v32
    %v40 = vstv %s26
    %v41 = vmul.f32 %v40, %v31
    %v42 = vadd.f32 %v39, %v41
    %v43 = vstv %s27
    %v44 = vmul.f32 %v31, %v43
    %v45 = vstv %s28
    %v46 = vmul.f32 %v45, %v32
    %v47 = vadd.f32 %v44, %v46
    %v48 = vmul.f32 %v42, %v47
    %v49 = vstv %s29
    %v50 = vmul.f32 %v48, %v49
    %v51 = vstv %s30
    %v52 = vadd.f32 %v50, %v51
    %v53 = vrcp.pop %v52
    %v54 = vmul.f32 %v37, %v53
    %55 = vst [vmem:[#allocation5] sm:$0x1] %v54
    // Predicated region
    $region14: #{tpu_custom_call.1} parent=1 // pred_check
      _
    $region15: #{tpu_custom_call.1} parent=1 // pred_check_branch
      %57 = sbr.rel (0) target = $region17
    $region16: #{tpu_custom_call.1} parent=1 // pred_region
      %s59 = ssub.s32 16, 16
      %60 = vsyncadd [#allocation3], %s59
      %s62 = sshll.u32 [#allocation5], 4
      %s63 = int_to_ptr.vmem [resolvable:$true] %s62
      %65 = dma.vmem_to_hbm [thread:$0]  %s63, 16, %s2, [#allocation3]
    $region17: #{tpu_custom_call.1} parent=1 // pred_fallthru
      _
    // Predicated region
    $region18: #{tpu_custom_call.1} parent=1 // pred_check
      _
    $region19: #{tpu_custom_call.1} parent=1 // pred_check_branch
      %67 = sbr.rel (0) target = $region21
    $region20: #{tpu_custom_call.1} parent=1 // pred_region
      %68 = dma.done [#allocation3], 16
    $region21: #{tpu_custom_call.1} parent=1 // pred_fallthru
      _
    %69 = vsyncpa [#allocation3], 1
    %70 = vsyncpa [#allocation4], 1

</llo_original>
